<compile_context>
chip_gen: v7x
topology: tpu7x:2x2x1
jax: 0.10.0
libtpu: 0.0.40
codegen_flags: <defaults>
</compile_context>

<pallas_src>
import functools

import jax
import jax.numpy as jnp
from jax import lax
from jax.experimental import pallas as pl
from jax.experimental.pallas import tpu as pltpu

_EPS2 = 1e-24                     # (1e-12)^2 : squared-norm clamp == torch F.normalize eps
_LANES = 512                      # preferred lane-dense width for the flattened heatmap view
_BLOCK_BYTES = 2 * 1024 * 1024    # ~2 MiB per input array per grid step


def _geo_loss(pts, geo_loss_gamma_horz, geo_loss_gamma_vert):
    """Geometric parallelism loss.

    pts: (K*2, B) float32, rows are [k0x, k0y, k1x, k1y, ...], batch on lanes.

    Uses mean_{i,j}(1 - a_i . b_j) = 1 - mean_i(a_i) . mean_j(b_j), which is exactly
    the torch.tensordot(dims=([1],[1])).mean() semantics of the reference.
    """
    def p(i):
        return pts[2 * i:2 * i + 2, :]                       # (2, B), static slice

    def mean_unit(a, b):
        d = p(a) - p(b)                                      # (2, B)
        n2 = jnp.sum(d * d, axis=0, keepdims=True)           # (1, B)
        inv = lax.rsqrt(jnp.maximum(n2, _EPS2))              # EUP rsqrt == 1/max(||d||,1e-12)
        return jnp.mean(d * inv, axis=1, keepdims=True)      # (2, 1) batch-mean unit vector

    def mdot(a, b):
        return jnp.sum(a * b)                                # scalar

    m53 = mean_unit(5, 3); m31 = mean_unit(3, 1); m10 = mean_unit(1, 0)
    m64 = mean_unit(6, 4); m42 = mean_unit(4, 2); m20 = mean_unit(2, 0)
    m21 = mean_unit(2, 1); m43 = mean_unit(4, 3); m65 = mean_unit(6, 5)

    vA = 1.0 - mdot(m31, m53)
    vB = 1.0 - mdot(m10, m31)
    vC = 1.0 - mdot(m64, m42)
    vD = 1.0 - mdot(m42, m20)
    hA = 1.0 - mdot(m43, m21)
    hB = 1.0 - mdot(m65, m43)

    factorA = geo_loss_gamma_horz * (hA + hB) / 2.0
    factorB = geo_loss_gamma_vert * (vA + vB + vC + vD) / 4.0
    return factorA + factorB


def _points_kernel(pts_ref, tpts_ref, out_ref, *, loss_type, include_geo,
                   geo_loss_gamma_horz, geo_loss_gamma_vert, batch):
    """softargmax / l1 loss types: only the (K*2, B) point tensors are read."""
    pts = pts_ref[...].astype(jnp.float32)
    tpts = tpts_ref[...].astype(jnp.float32)
    diff = pts - tpts

    if loss_type in ("l2_softargmax", "l2_sm"):
        location_loss = jnp.sum(diff * diff) / batch      # sum over keypoints&xy, mean over B
    elif loss_type in ("l1_softargmax", "l1_sm"):
        location_loss = jnp.sum(jnp.abs(diff)) / batch
    else:
        raise ValueError(f"unexpected loss_type for points kernel: {loss_type}")

    if include_geo:
        geo_loss = _geo_loss(pts, geo_loss_gamma_horz, geo_loss_gamma_vert)
    else:
        # TODO(synk): PyTorch returns torch.tensor(0) (int64) here; we emit float32 0.
        geo_loss = jnp.float32(0.0)

    out_ref[0] = location_loss.astype(jnp.float32)
    out_ref[1] = jnp.asarray(geo_loss, jnp.float32)
    out_ref[2] = (location_loss + geo_loss).astype(jnp.float32)


def _heatmap_kernel(*refs, include_geo, geo_loss_gamma_horz, geo_loss_gamma_vert,
                    batch, rows, block_rows, needs_mask):
    """l2_heatmap loss: pipelined lane-dense streaming reduction + geo loss at last step."""
    if include_geo:
        hm_ref, thm_ref, pts_ref, out_ref, acc_ref = refs
    else:
        hm_ref, thm_ref, out_ref, acc_ref = refs
        pts_ref = None

    step = pl.program_id(0)

    @pl.when(step == 0)
    def _():
        acc_ref[...] = jnp.zeros_like(acc_ref)

    d = hm_ref[...].astype(jnp.float32) - thm_ref[...].astype(jnp.float32)
    dsq = d * d
    if needs_mask:
        # The final grid block may extend past `rows`; zero the out-of-bounds rows.
        row = step * block_rows + lax.broadcasted_iota(jnp.int32, dsq.shape, 0)
        dsq = jnp.where(row < rows, dsq, 0.0)

    # Lane-parallel partial sums; cross-lane collapse only once, at the last step.
    acc_ref[...] += jnp.sum(dsq, axis=0, keepdims=True)

    @pl.when(step == pl.num_programs(0) - 1)
    def _():
        location_loss = jnp.sum(acc_ref[...]) / batch
        if include_geo:
            geo_loss = _geo_loss(pts_ref[...].astype(jnp.float32),
                                 geo_loss_gamma_horz, geo_loss_gamma_vert)
        else:
            # TODO(synk): PyTorch returns torch.tensor(0) (int64) here; we emit float32 0.
            geo_loss = jnp.float32(0.0)
        out_ref[0] = location_loss.astype(jnp.float32)
        out_ref[1] = jnp.asarray(geo_loss, jnp.float32)
        out_ref[2] = (location_loss + geo_loss).astype(jnp.float32)


def cross_ratio_loss(heatmap, points, target_hm, target_points, *,
                     loss_type="l2_softargmax", include_geo=True,
                     geo_loss_gamma_horz=0.05, geo_loss_gamma_vert=0.05):
    """Returns (location_loss, geo_loss, total_loss) as float32 scalars."""
    if loss_type in ("l2_softargmax", "l2_sm", "l1_softargmax", "l1_sm"):
        is_hm = False
    elif loss_type in ("l2_heatmap", "l2_hm"):
        is_hm = True
    else:
        raise ValueError(f"unknown loss_type: {loss_type}")

    B, K, D = points.shape
    assert D == 2, "CrossRatioLoss needs (x, y) keypoint coordinates"
    assert (not include_geo) or K >= 7, "geometric loss needs >=7 keypoints"

    # (B, K, 2) -> (K*2, B): batch on the 128-lane axis. Tiny layout-plumbing op in XLA.
    pts_t = jnp.transpose(points, (1, 2, 0)).reshape(K * D, B)
    tpts_t = jnp.transpose(target_points, (1, 2, 0)).reshape(K * D, B)

    if not is_hm:
        # Heatmaps are never touched (no dead HBM->VMEM DMA).  Launch-overhead bound;
        # no further tuning levers exist at this size.
        kernel = functools.partial(
            _points_kernel, loss_type=loss_type, include_geo=include_geo,
            geo_loss_gamma_horz=float(geo_loss_gamma_horz),
            geo_loss_gamma_vert=float(geo_loss_gamma_vert), batch=float(B))
        out = pl.pallas_call(
            kernel,
            out_shape=jax.ShapeDtypeStruct((3,), jnp.float32),
            in_specs=[pl.BlockSpec(memory_space=pltpu.MemorySpace.VMEM)] * 2,
            out_specs=pl.BlockSpec(memory_space=pltpu.MemorySpace.SMEM),
        )(pts_t, tpts_t)
    else:
        # Choose a pad-free 2-D view of each heatmap (contiguous reshape: no data movement).
        n = heatmap.size
        hw = heatmap.shape[-1] * heatmap.shape[-2]
        if n % _LANES == 0:
            cols = _LANES                      # lane-dense 512-wide view
        elif n % 128 == 0:
            cols = 128
        else:
            cols = hw                          # last dim == full array dim -> no (8,128) issue
        rows = n // cols
        hm2 = heatmap.reshape(rows, cols)
        thm2 = target_hm.reshape(rows, cols)

        # Block sizing: ~2 MiB per input array per step (sublane dim multiple of 8),
        # or the whole array in one block when it already fits the budget.
        max_rows = max(8, (_BLOCK_BYTES // (cols * 4)) // 8 * 8)
        if rows <= max_rows:
            block_rows, grid_steps, needs_mask = rows, 1, False
        else:
            block_rows = max_rows
            grid_steps = -(-rows // block_rows)
            needs_mask = (rows % block_rows) != 0

        kernel = functools.partial(
            _heatmap_kernel, include_geo=include_geo,
            geo_loss_gamma_horz=float(geo_loss_gamma_horz),
            geo_loss_gamma_vert=float(geo_loss_gamma_vert),
            batch=float(B), rows=rows, block_rows=block_rows, needs_mask=needs_mask)

        in_specs = [pl.BlockSpec((block_rows, cols), lambda i: (i, 0)),
                    pl.BlockSpec((block_rows, cols), lambda i: (i, 0))]
        args = [hm2, thm2]
        if include_geo:
            # Tiny resident points block, only passed when the geo term is requested.
            in_specs.append(pl.BlockSpec((K * D, B), lambda i: (0, 0)))
            args.append(pts_t)

        out = pl.pallas_call(
            kernel,
            out_shape=jax.ShapeDtypeStruct((3,), jnp.float32),
            grid_spec=pltpu.PrefetchScalarGridSpec(
                num_scalar_prefetch=0,
                grid=(grid_steps,),
                in_specs=in_specs,
                out_specs=pl.BlockSpec((3,), lambda i: (0,),
                                       memory_space=pltpu.MemorySpace.SMEM),
                scratch_shapes=[pltpu.VMEM((1, cols), jnp.float32)]),
            compiler_params=pltpu.CompilerParams(
                dimension_semantics=("arbitrary",),
                vmem_limit_bytes=32 * 1024 * 1024),
        )(*args)

    return out[0], out[1], out[2]


# ----------------------------------------------------------------------------
# Pure-JAX reference (mirrors the PyTorch module) for a correctness spot-check.
# ----------------------------------------------------------------------------
def _reference(heatmap, points, target_hm, target_points, *, loss_type,
               include_geo, gh, gv):
    points = points.astype(jnp.float32)
    target_points = target_points.astype(jnp.float32)
    if loss_type in ("l2_softargmax", "l2_sm"):
        loc = jnp.sum((points - target_points) ** 2, axis=(1, 2)).mean()
    elif loss_type in ("l2_heatmap", "l2_hm"):
        loc = jnp.sum((heatmap.astype(jnp.float32) - target_hm.astype(jnp.float32)) ** 2,
                      axis=(1, 2, 3)).mean()
    else:
        loc = jnp.sum(jnp.abs(points - target_points), axis=(1, 2)).mean()
    if include_geo:
        def nrm(v):
            n = jnp.sqrt(jnp.sum(v * v, axis=1, keepdims=True))
            return v / jnp.maximum(n, 1e-12)
        p = lambda i: points[:, i]
        v53 = nrm(p(5) - p(3)); v31 = nrm(p(3) - p(1)); v10 = nrm(p(1) - p(0))
        v64 = nrm(p(6) - p(4)); v42 = nrm(p(4) - p(2)); v20 = nrm(p(2) - p(0))
        h21 = nrm(p(2) - p(1)); h43 = nrm(p(4) - p(3)); h65 = nrm(p(6) - p(5))
        dm = lambda a, b: jnp.mean(1.0 - a @ b.T)
        geo = (gh * (dm(h43, h21) + dm(h65, h43)) / 2.0
               + gv * (dm(v31, v53) + dm(v10, v31) + dm(v64, v42) + dm(v42, v20)) / 4.0)
    else:
        geo = jnp.float32(0.0)
    return loc, geo, loc + geo


if __name__ == "__main__":
    gh, gv = 0.05, 0.05
    results = []
    refs = []

    def run_case(seed, B, K, H, W, loss_type, include_geo):
        k1, k2, k3, k4 = jax.random.split(jax.random.PRNGKey(seed), 4)
        hm = jax.random.uniform(k1, (B, K, H, W), dtype=jnp.float32)
        thm = jax.random.uniform(k2, (B, K, H, W), dtype=jnp.float32)
        pts = jax.random.uniform(k3, (B, K, 2), dtype=jnp.float32)
        tpts = jax.random.uniform(k4, (B, K, 2), dtype=jnp.float32)
        results.extend(cross_ratio_loss(hm, pts, thm, tpts, loss_type=loss_type,
                                        include_geo=include_geo,
                                        geo_loss_gamma_horz=gh, geo_loss_gamma_vert=gv))
        refs.extend(_reference(hm, pts, thm, tpts, loss_type=loss_type,
                               include_geo=include_geo, gh=gh, gv=gv))

    # points paths (heatmaps never DMA'd)
    run_case(0, B=2, K=7, H=16, W=16, loss_type="l2_softargmax", include_geo=True)
    run_case(2, B=2, K=7, H=16, W=16, loss_type="l1_softargmax", include_geo=False)

    # heatmap path: lane-dense 512-wide view, single block
    run_case(0, B=2, K=7, H=16, W=16, loss_type="l2_heatmap", include_geo=True)
    # heatmap path: rows=350 (non-multiple-of-8), still a single full-dim block, no padding
    run_case(1, B=4, K=7, H=80, W=80, loss_type="l2_heatmap", include_geo=True)
    # heatmap path: multiple pipelined grid steps + masked ragged final block
    run_case(3, B=8, K=7, H=160, W=160, loss_type="l2_heatmap", include_geo=True)
    # heatmap path: H*W not divisible by 128 -> (B*K, H*W) view; no points DMA (geo off)
    run_case(4, B=2, K=7, H=15, W=15, loss_type="l2_heatmap", include_geo=False)

    jax.block_until_ready(results)

    for got, want in zip(results, refs):
        g, w = float(got), float(want)
        assert abs(g - w) <= 2e-3 * max(1.0, abs(w)), (g, w)

    print("KERNEL_OK")
</pallas_src>

<mosaic_0001>
module attributes {stable_mosaic.version = 11 : i64} {
  func.func @_points_kernel(%arg0: memref<14x2xf32, #tpu.memory_space<vmem>>, %arg1: memref<14x2xf32, #tpu.memory_space<vmem>>, %arg2: memref<3xf32, #tpu.memory_space<smem>>) attributes {dimension_semantics = [], scalar_prefetch = 0 : i64, scratch_operands = 0 : i64, tpu.core_type = #tpu.core_type<tc>} {
    %c0 = arith.constant 0 : index
    %c0_0 = arith.constant 0 : index
    %0 = vector.load %arg0[%c0, %c0_0] : memref<14x2xf32, #tpu.memory_space<vmem>>, vector<14x2xf32>
    %c0_1 = arith.constant 0 : index
    %c0_2 = arith.constant 0 : index
    %1 = vector.load %arg1[%c0_1, %c0_2] : memref<14x2xf32, #tpu.memory_space<vmem>>, vector<14x2xf32>
    %2 = arith.subf %0, %1 : vector<14x2xf32>
    %3 = arith.mulf %2, %2 : vector<14x2xf32>
    %4 = vector.shape_cast %3 : vector<14x2xf32> to vector<1x14x2xf32>
    %cst = arith.constant dense<0.000000e+00> : vector<1xf32>
    %5 = vector.multi_reduction <add>, %4, %cst [1, 2] : vector<1x14x2xf32> to vector<1xf32>
    %6 = vector.shape_cast %5 : vector<1xf32> to vector<1x1x1xf32>
    %7 = vector.extract %6[0, 0, 0] : f32 from vector<1x1x1xf32>
    %cst_3 = arith.constant 2.000000e+00 : f32
    %8 = arith.divf %7, %cst_3 : f32
    %9 = vector.extract_strided_slice %0 {offsets = [10, 0], sizes = [2, 2], strides = [1, 1]} : vector<14x2xf32> to vector<2x2xf32>
    %10 = vector.extract_strided_slice %0 {offsets = [6, 0], sizes = [2, 2], strides = [1, 1]} : vector<14x2xf32> to vector<2x2xf32>
    %11 = arith.subf %9, %10 : vector<2x2xf32>
    %12 = arith.mulf %11, %11 : vector<2x2xf32>
    %cst_4 = arith.constant dense<0.000000e+00> : vector<2xf32>
    %13 = vector.multi_reduction <add>, %12, %cst_4 [0] : vector<2x2xf32> to vector<2xf32>
    %14 = vector.shape_cast %13 : vector<2xf32> to vector<1x2xf32>
    %cst_5 = arith.constant 1.000000e-24 : f32
    %15 = vector.broadcast %cst_5 : f32 to vector<1x2xf32>
    %16 = arith.maximumf %14, %15 : vector<1x2xf32>
    %17 = math.rsqrt %16 : vector<1x2xf32>
    %18 = vector.broadcast %17 : vector<1x2xf32> to vector<2x2xf32>
    %19 = arith.mulf %11, %18 : vector<2x2xf32>
    %cst_6 = arith.constant dense<0.000000e+00> : vector<2xf32>
    %20 = vector.multi_reduction <add>, %19, %cst_6 [1] : vector<2x2xf32> to vector<2xf32>
    %21 = vector.shape_cast %20 : vector<2xf32> to vector<2x1xf32>
    %cst_7 = arith.constant 2.000000e+00 : f32
    %22 = vector.broadcast %cst_7 : f32 to vector<2x1xf32>
    %23 = arith.divf %21, %22 : vector<2x1xf32>
    %24 = vector.extract_strided_slice %0 {offsets = [6, 0], sizes = [2, 2], strides = [1, 1]} : vector<14x2xf32> to vector<2x2xf32>
    %25 = vector.extract_strided_slice %0 {offsets = [2, 0], sizes = [2, 2], strides = [1, 1]} : vector<14x2xf32> to vector<2x2xf32>
    %26 = arith.subf %24, %25 : vector<2x2xf32>
    %27 = arith.mulf %26, %26 : vector<2x2xf32>
    %cst_8 = arith.constant dense<0.000000e+00> : vector<2xf32>
    %28 = vector.multi_reduction <add>, %27, %cst_8 [0] : vector<2x2xf32> to vector<2xf32>
    %29 = vector.shape_cast %28 : vector<2xf32> to vector<1x2xf32>
    %cst_9 = arith.constant 1.000000e-24 : f32
    %30 = vector.broadcast %cst_9 : f32 to vector<1x2xf32>
    %31 = arith.maximumf %29, %30 : vector<1x2xf32>
    %32 = math.rsqrt %31 : vector<1x2xf32>
    %33 = vector.broadcast %32 : vector<1x2xf32> to vector<2x2xf32>
    %34 = arith.mulf %26, %33 : vector<2x2xf32>
    %cst_10 = arith.constant dense<0.000000e+00> : vector<2xf32>
    %35 = vector.multi_reduction <add>, %34, %cst_10 [1] : vector<2x2xf32> to vector<2xf32>
    %36 = vector.shape_cast %35 : vector<2xf32> to vector<2x1xf32>
    %cst_11 = arith.constant 2.000000e+00 : f32
    %37 = vector.broadcast %cst_11 : f32 to vector<2x1xf32>
    %38 = arith.divf %36, %37 : vector<2x1xf32>
    %39 = vector.extract_strided_slice %0 {offsets = [2, 0], sizes = [2, 2], strides = [1, 1]} : vector<14x2xf32> to vector<2x2xf32>
    %40 = vector.extract_strided_slice %0 {offsets = [0, 0], sizes = [2, 2], strides = [1, 1]} : vector<14x2xf32> to vector<2x2xf32>
    %41 = arith.subf %39, %40 : vector<2x2xf32>
    %42 = arith.mulf %41, %41 : vector<2x2xf32>
    %cst_12 = arith.constant dense<0.000000e+00> : vector<2xf32>
    %43 = vector.multi_reduction <add>, %42, %cst_12 [0] : vector<2x2xf32> to vector<2xf32>
    %44 = vector.shape_cast %43 : vector<2xf32> to vector<1x2xf32>
    %cst_13 = arith.constant 1.000000e-24 : f32
    %45 = vector.broadcast %cst_13 : f32 to vector<1x2xf32>
    %46 = arith.maximumf %44, %45 : vector<1x2xf32>
    %47 = math.rsqrt %46 : vector<1x2xf32>
    %48 = vector.broadcast %47 : vector<1x2xf32> to vector<2x2xf32>
    %49 = arith.mulf %41, %48 : vector<2x2xf32>
    %cst_14 = arith.constant dense<0.000000e+00> : vector<2xf32>
    %50 = vector.multi_reduction <add>, %49, %cst_14 [1] : vector<2x2xf32> to vector<2xf32>
    %51 = vector.shape_cast %50 : vector<2xf32> to vector<2x1xf32>
    %cst_15 = arith.constant 2.000000e+00 : f32
    %52 = vector.broadcast %cst_15 : f32 to vector<2x1xf32>
    %53 = arith.divf %51, %52 : vector<2x1xf32>
    %54 = vector.extract_strided_slice %0 {offsets = [12, 0], sizes = [2, 2], strides = [1, 1]} : vector<14x2xf32> to vector<2x2xf32>
    %55 = vector.extract_strided_slice %0 {offsets = [8, 0], sizes = [2, 2], strides = [1, 1]} : vector<14x2xf32> to vector<2x2xf32>
    %56 = arith.subf %54, %55 : vector<2x2xf32>
    %57 = arith.mulf %56, %56 : vector<2x2xf32>
    %cst_16 = arith.constant dense<0.000000e+00> : vector<2xf32>
    %58 = vector.multi_reduction <add>, %57, %cst_16 [0] : vector<2x2xf32> to vector<2xf32>
    %59 = vector.shape_cast %58 : vector<2xf32> to vector<1x2xf32>
    %cst_17 = arith.constant 1.000000e-24 : f32
    %60 = vector.broadcast %cst_17 : f32 to vector<1x2xf32>
    %61 = arith.maximumf %59, %60 : vector<1x2xf32>
    %62 = math.rsqrt %61 : vector<1x2xf32>
    %63 = vector.broadcast %62 : vector<1x2xf32> to vector<2x2xf32>
    %64 = arith.mulf %56, %63 : vector<2x2xf32>
    %cst_18 = arith.constant dense<0.000000e+00> : vector<2xf32>
    %65 = vector.multi_reduction <add>, %64, %cst_18 [1] : vector<2x2xf32> to vector<2xf32>
    %66 = vector.shape_cast %65 : vector<2xf32> to vector<2x1xf32>
    %cst_19 = arith.constant 2.000000e+00 : f32
    %67 = vector.broadcast %cst_19 : f32 to vector<2x1xf32>
    %68 = arith.divf %66, %67 : vector<2x1xf32>
    %69 = vector.extract_strided_slice %0 {offsets = [8, 0], sizes = [2, 2], strides = [1, 1]} : vector<14x2xf32> to vector<2x2xf32>
    %70 = vector.extract_strided_slice %0 {offsets = [4, 0], sizes = [2, 2], strides = [1, 1]} : vector<14x2xf32> to vector<2x2xf32>
    %71 = arith.subf %69, %70 : vector<2x2xf32>
    %72 = arith.mulf %71, %71 : vector<2x2xf32>
    %cst_20 = arith.constant dense<0.000000e+00> : vector<2xf32>
    %73 = vector.multi_reduction <add>, %72, %cst_20 [0] : vector<2x2xf32> to vector<2xf32>
    %74 = vector.shape_cast %73 : vector<2xf32> to vector<1x2xf32>
    %cst_21 = arith.constant 1.000000e-24 : f32
    %75 = vector.broadcast %cst_21 : f32 to vector<1x2xf32>
    %76 = arith.maximumf %74, %75 : vector<1x2xf32>
    %77 = math.rsqrt %76 : vector<1x2xf32>
    %78 = vector.broadcast %77 : vector<1x2xf32> to vector<2x2xf32>
    %79 = arith.mulf %71, %78 : vector<2x2xf32>
    %cst_22 = arith.constant dense<0.000000e+00> : vector<2xf32>
    %80 = vector.multi_reduction <add>, %79, %cst_22 [1] : vector<2x2xf32> to vector<2xf32>
    %81 = vector.shape_cast %80 : vector<2xf32> to vector<2x1xf32>
    %cst_23 = arith.constant 2.000000e+00 : f32
    %82 = vector.broadcast %cst_23 : f32 to vector<2x1xf32>
    %83 = arith.divf %81, %82 : vector<2x1xf32>
    %84 = vector.extract_strided_slice %0 {offsets = [4, 0], sizes = [2, 2], strides = [1, 1]} : vector<14x2xf32> to vector<2x2xf32>
    %85 = vector.extract_strided_slice %0 {offsets = [0, 0], sizes = [2, 2], strides = [1, 1]} : vector<14x2xf32> to vector<2x2xf32>
    %86 = arith.subf %84, %85 : vector<2x2xf32>
    %87 = arith.mulf %86, %86 : vector<2x2xf32>
    %cst_24 = arith.constant dense<0.000000e+00> : vector<2xf32>
    %88 = vector.multi_reduction <add>, %87, %cst_24 [0] : vector<2x2xf32> to vector<2xf32>
    %89 = vector.shape_cast %88 : vector<2xf32> to vector<1x2xf32>
    %cst_25 = arith.constant 1.000000e-24 : f32
    %90 = vector.broadcast %cst_25 : f32 to vector<1x2xf32>
    %91 = arith.maximumf %89, %90 : vector<1x2xf32>
    %92 = math.rsqrt %91 : vector<1x2xf32>
    %93 = vector.broadcast %92 : vector<1x2xf32> to vector<2x2xf32>
    %94 = arith.mulf %86, %93 : vector<2x2xf32>
    %cst_26 = arith.constant dense<0.000000e+00> : vector<2xf32>
    %95 = vector.multi_reduction <add>, %94, %cst_26 [1] : vector<2x2xf32> to vector<2xf32>
    %96 = vector.shape_cast %95 : vector<2xf32> to vector<2x1xf32>
    %cst_27 = arith.constant 2.000000e+00 : f32
    %97 = vector.broadcast %cst_27 : f32 to vector<2x1xf32>
    %98 = arith.divf %96, %97 : vector<2x1xf32>
    %99 = vector.extract_strided_slice %0 {offsets = [4, 0], sizes = [2, 2], strides = [1, 1]} : vector<14x2xf32> to vector<2x2xf32>
    %100 = vector.extract_strided_slice %0 {offsets = [2, 0], sizes = [2, 2], strides = [1, 1]} : vector<14x2xf32> to vector<2x2xf32>
    %101 = arith.subf %99, %100 : vector<2x2xf32>
    %102 = arith.mulf %101, %101 : vector<2x2xf32>
    %cst_28 = arith.constant dense<0.000000e+00> : vector<2xf32>
    %103 = vector.multi_reduction <add>, %102, %cst_28 [0] : vector<2x2xf32> to vector<2xf32>
    %104 = vector.shape_cast %103 : vector<2xf32> to vector<1x2xf32>
    %cst_29 = arith.constant 1.000000e-24 : f32
    %105 = vector.broadcast %cst_29 : f32 to vector<1x2xf32>
    %106 = arith.maximumf %104, %105 : vector<1x2xf32>
    %107 = math.rsqrt %106 : vector<1x2xf32>
    %108 = vector.broadcast %107 : vector<1x2xf32> to vector<2x2xf32>
    %109 = arith.mulf %101, %108 : vector<2x2xf32>
    %cst_30 = arith.constant dense<0.000000e+00> : vector<2xf32>
    %110 = vector.multi_reduction <add>, %109, %cst_30 [1] : vector<2x2xf32> to vector<2xf32>
    %111 = vector.shape_cast %110 : vector<2xf32> to vector<2x1xf32>
    %cst_31 = arith.constant 2.000000e+00 : f32
    %112 = vector.broadcast %cst_31 : f32 to vector<2x1xf32>
    %113 = arith.divf %111, %112 : vector<2x1xf32>
    %114 = vector.extract_strided_slice %0 {offsets = [8, 0], sizes = [2, 2], strides = [1, 1]} : vector<14x2xf32> to vector<2x2xf32>
    %115 = vector.extract_strided_slice %0 {offsets = [6, 0], sizes = [2, 2], strides = [1, 1]} : vector<14x2xf32> to vector<2x2xf32>
    %116 = arith.subf %114, %115 : vector<2x2xf32>
    %117 = arith.mulf %116, %116 : vector<2x2xf32>
    %cst_32 = arith.constant dense<0.000000e+00> : vector<2xf32>
    %118 = vector.multi_reduction <add>, %117, %cst_32 [0] : vector<2x2xf32> to vector<2xf32>
    %119 = vector.shape_cast %118 : vector<2xf32> to vector<1x2xf32>
    %cst_33 = arith.constant 1.000000e-24 : f32
    %120 = vector.broadcast %cst_33 : f32 to vector<1x2xf32>
    %121 = arith.maximumf %119, %120 : vector<1x2xf32>
    %122 = math.rsqrt %121 : vector<1x2xf32>
    %123 = vector.broadcast %122 : vector<1x2xf32> to vector<2x2xf32>
    %124 = arith.mulf %116, %123 : vector<2x2xf32>
    %cst_34 = arith.constant dense<0.000000e+00> : vector<2xf32>
    %125 = vector.multi_reduction <add>, %124, %cst_34 [1] : vector<2x2xf32> to vector<2xf32>
    %126 = vector.shape_cast %125 : vector<2xf32> to vector<2x1xf32>
    %cst_35 = arith.constant 2.000000e+00 : f32
    %127 = vector.broadcast %cst_35 : f32 to vector<2x1xf32>
    %128 = arith.divf %126, %127 : vector<2x1xf32>
    %129 = vector.extract_strided_slice %0 {offsets = [12, 0], sizes = [2, 2], strides = [1, 1]} : vector<14x2xf32> to vector<2x2xf32>
    %130 = vector.extract_strided_slice %0 {offsets = [10, 0], sizes = [2, 2], strides = [1, 1]} : vector<14x2xf32> to vector<2x2xf32>
    %131 = arith.subf %129, %130 : vector<2x2xf32>
    %132 = arith.mulf %131, %131 : vector<2x2xf32>
    %cst_36 = arith.constant dense<0.000000e+00> : vector<2xf32>
    %133 = vector.multi_reduction <add>, %132, %cst_36 [0] : vector<2x2xf32> to vector<2xf32>
    %134 = vector.shape_cast %133 : vector<2xf32> to vector<1x2xf32>
    %cst_37 = arith.constant 1.000000e-24 : f32
    %135 = vector.broadcast %cst_37 : f32 to vector<1x2xf32>
    %136 = arith.maximumf %134, %135 : vector<1x2xf32>
    %137 = math.rsqrt %136 : vector<1x2xf32>
    %138 = vector.broadcast %137 : vector<1x2xf32> to vector<2x2xf32>
    %139 = arith.mulf %131, %138 : vector<2x2xf32>
    %cst_38 = arith.constant dense<0.000000e+00> : vector<2xf32>
    %140 = vector.multi_reduction <add>, %139, %cst_38 [1] : vector<2x2xf32> to vector<2xf32>
    %141 = vector.shape_cast %140 : vector<2xf32> to vector<2x1xf32>
    %cst_39 = arith.constant 2.000000e+00 : f32
    %142 = vector.broadcast %cst_39 : f32 to vector<2x1xf32>
    %143 = arith.divf %141, %142 : vector<2x1xf32>
    %144 = arith.mulf %38, %23 : vector<2x1xf32>
    %145 = vector.shape_cast %144 : vector<2x1xf32> to vector<1x2x1xf32>
    %cst_40 = arith.constant dense<0.000000e+00> : vector<1xf32>
    %146 = vector.multi_reduction <add>, %145, %cst_40 [1, 2] : vector<1x2x1xf32> to vector<1xf32>
    %147 = vector.shape_cast %146 : vector<1xf32> to vector<1x1x1xf32>
    %148 = vector.extract %147[0, 0, 0] : f32 from vector<1x1x1xf32>
    %cst_41 = arith.constant 1.000000e+00 : f32
    %149 = arith.subf %cst_41, %148 : f32
    %150 = arith.mulf %53, %38 : vector<2x1xf32>
    %151 = vector.shape_cast %150 : vector<2x1xf32> to vector<1x2x1xf32>
    %cst_42 = arith.constant dense<0.000000e+00> : vector<1xf32>
    %152 = vector.multi_reduction <add>, %151, %cst_42 [1, 2] : vector<1x2x1xf32> to vector<1xf32>
    %153 = vector.shape_cast %152 : vector<1xf32> to vector<1x1x1xf32>
    %154 = vector.extract %153[0, 0, 0] : f32 from vector<1x1x1xf32>
    %cst_43 = arith.constant 1.000000e+00 : f32
    %155 = arith.subf %cst_43, %154 : f32
    %156 = arith.mulf %68, %83 : vector<2x1xf32>
    %157 = vector.shape_cast %156 : vector<2x1xf32> to vector<1x2x1xf32>
    %cst_44 = arith.constant dense<0.000000e+00> : vector<1xf32>
    %158 = vector.multi_reduction <add>, %157, %cst_44 [1, 2] : vector<1x2x1xf32> to vector<1xf32>
    %159 = vector.shape_cast %158 : vector<1xf32> to vector<1x1x1xf32>
    %160 = vector.extract %159[0, 0, 0] : f32 from vector<1x1x1xf32>
    %cst_45 = arith.constant 1.000000e+00 : f32
    %161 = arith.subf %cst_45, %160 : f32
    %162 = arith.mulf %83, %98 : vector<2x1xf32>
    %163 = vector.shape_cast %162 : vector<2x1xf32> to vector<1x2x1xf32>
    %cst_46 = arith.constant dense<0.000000e+00> : vector<1xf32>
    %164 = vector.multi_reduction <add>, %163, %cst_46 [1, 2] : vector<1x2x1xf32> to vector<1xf32>
    %165 = vector.shape_cast %164 : vector<1xf32> to vector<1x1x1xf32>
    %166 = vector.extract %165[0, 0, 0] : f32 from vector<1x1x1xf32>
    %cst_47 = arith.constant 1.000000e+00 : f32
    %167 = arith.subf %cst_47, %166 : f32
    %168 = arith.mulf %128, %113 : vector<2x1xf32>
    %169 = vector.shape_cast %168 : vector<2x1xf32> to vector<1x2x1xf32>
    %cst_48 = arith.constant dense<0.000000e+00> : vector<1xf32>
    %170 = vector.multi_reduction <add>, %169, %cst_48 [1, 2] : vector<1x2x1xf32> to vector<1xf32>
    %171 = vector.shape_cast %170 : vector<1xf32> to vector<1x1x1xf32>
    %172 = vector.extract %171[0, 0, 0] : f32 from vector<1x1x1xf32>
    %cst_49 = arith.constant 1.000000e+00 : f32
    %173 = arith.subf %cst_49, %172 : f32
    %174 = arith.mulf %143, %128 : vector<2x1xf32>
    %175 = vector.shape_cast %174 : vector<2x1xf32> to vector<1x2x1xf32>
    %cst_50 = arith.constant dense<0.000000e+00> : vector<1xf32>
    %176 = vector.multi_reduction <add>, %175, %cst_50 [1, 2] : vector<1x2x1xf32> to vector<1xf32>
    %177 = vector.shape_cast %176 : vector<1xf32> to vector<1x1x1xf32>
    %178 = vector.extract %177[0, 0, 0] : f32 from vector<1x1x1xf32>
    %cst_51 = arith.constant 1.000000e+00 : f32
    %179 = arith.subf %cst_51, %178 : f32
    %180 = arith.addf %173, %179 : f32
    %cst_52 = arith.constant 5.000000e-02 : f32
    %181 = arith.mulf %cst_52, %180 : f32
    %cst_53 = arith.constant 2.000000e+00 : f32
    %182 = arith.divf %181, %cst_53 : f32
    %183 = arith.addf %149, %155 : f32
    %184 = arith.addf %183, %161 : f32
    %185 = arith.addf %184, %167 : f32
    %cst_54 = arith.constant 5.000000e-02 : f32
    %186 = arith.mulf %cst_54, %185 : f32
    %cst_55 = arith.constant 4.000000e+00 : f32
    %187 = arith.divf %186, %cst_55 : f32
    %188 = arith.addf %182, %187 : f32
    %c0_56 = arith.constant 0 : index
    %189 = memref.load %arg2[%c0_56] : memref<3xf32, #tpu.memory_space<smem>>
    memref.store %8, %arg2[%c0_56] : memref<3xf32, #tpu.memory_space<smem>>
    %c1 = arith.constant 1 : index
    %190 = memref.load %arg2[%c1] : memref<3xf32, #tpu.memory_space<smem>>
    memref.store %188, %arg2[%c1] : memref<3xf32, #tpu.memory_space<smem>>
    %191 = arith.addf %8, %188 : f32
    %c2 = arith.constant 2 : index
    %192 = memref.load %arg2[%c2] : memref<3xf32, #tpu.memory_space<smem>>
    memref.store %191, %arg2[%c2] : memref<3xf32, #tpu.memory_space<smem>>
    return
  }
}

</mosaic_0001>

<llo_original>
// kernel: tpu_custom_call.1
$region0: #{tpu_custom_call.1}
  #allocation0 [shape = 'u32[]', space=smem, size = 0x4, offset = 0x4, fixed_abs, tag = 'smem constant byte address 0x4 - core index']
  #allocation1 [shape = 'u32[144,128]{1,0:T(1,128)}', space=vmem, size = 0x12000, scoped, tag = 'internal scratch']
  %s0 = inlined_call_operand.vmem [shape: f32[14,2], index: 0, kind: input, shape index: {}]
  %s1 = inlined_call_operand.vmem [shape: f32[14,2], index: 1, kind: input, shape index: {}]
  %s2 = inlined_call_operand.hbm [shape: f32[3], index: 2, kind: output, shape index: {}]
  %s3 = sld [smem:[#allocation0]]
  $region18: #{tpu_custom_call.1} parent=0
    _
  %s5 = ssub.s32 1, %s3
  %s6 = scalar_select 0, %s5, %s3
  $region1: #{tpu_custom_call.1} parent=0
    #allocation2 [shape = 'u8[512]{0}', space=smem, size = 0x200, scoped, tag = 'output window, operand 0, single buffered']
    #allocation3 [shape = 's32[1]{0}', space=sflag, size = 0x4, scoped, tag = 'scoped memory for tpu_custom_call.1']
    %7 = vsyncpa [#allocation3], 0
    // Predicated region
    $region2: #{tpu_custom_call.1} parent=1 // pred_check
      _
    $region3: #{tpu_custom_call.1} parent=1 // pred_check_branch
      %9 = sbr.rel (0) target = $region5
    $region4: #{tpu_custom_call.1} parent=1 // pred_region
      _
    $region5: #{tpu_custom_call.1} parent=1 // pred_fallthru
      _
    // Predicated region
    $region6: #{tpu_custom_call.1} parent=1 // pred_check
      _
    $region7: #{tpu_custom_call.1} parent=1 // pred_check_branch
      %11 = sbr.rel (0) target = $region9
    $region8: #{tpu_custom_call.1} parent=1 // pred_region
      _
    $region9: #{tpu_custom_call.1} parent=1 // pred_fallthru
      _
    %v12 = vld [vmem:[%s0] sm:$0xff]
    %v13 = vld [vmem:[%s0 + $0x8] sm:$0x3f]
    %v14 = vld [vmem:[%s1] sm:$0xff]
    %v15 = vld [vmem:[%s1 + $0x8] sm:$0x3f]
    %v16 = vsub.f32 %v12, %v14
    %v17 = vsub.f32 %v13, %v15
    %v18 = vmul.f32 %v16, %v16
    %v19 = vmul.f32 %v17, %v17
    %vm20 = vcmask 15360
    %v21 = vsel %vm20, %v18, 0.0
    %vm22 = vcmask 13312
    %v23 = vsel %vm22, %v19, 0.0
    %v24 = vadd.f32 %v21, %v23
    %25 = vadd.xlane.f32.xlu0 %v24
    %v26 = vpop.xlane.xlu0 %25
    %v27 = vrot.slane %v26, 4
    %v28 = vadd.f32 %v26, %v27
    %v29 = vrot.slane %v28, 2
    %v30 = vadd.f32 %v28, %v29
    %v31 = vrot.slane %v30, 1
    %v32 = vadd.f32 %v30, %v31
    %s33 = vtos %v32
    %v34 = vrcp.pop 2.0
    %s35 = vtos %v34
    %s36 = smul.f32 %s33, %s35
    %v38 = vrot.slane %v12, 4
    %v40 = vsub.f32 %v13, %v38
    %v41 = vmul.f32 %v40, %v40
    %v43 = vrot.slane %v41, 2
    %vm45 = vcmask 9216
    %v46 = vsel %vm45, %v43, 0.0
    %v47 = vrot.slane %v46, 4
    %v48 = vadd.f32 %v46, %v47
    %v49 = vrot.slane %v48, 2
    %v50 = vadd.f32 %v48, %v49
    %v51 = vrot.slane %v50, 1
    %v52 = vadd.f32 %v50, %v51
    %v53 = vmax.f32 %v52, 1e-24
    %v54 = vrsqrt.pop %v53
    %v55 = vmul.f32 %v40, %v54
    %vm56 = vcmask 11266
    %v57 = vsel %vm56, %v55, 0.0
    %58 = vadd.xlane.f32.xlu0 %v57
    %v59 = vpop.xlane.xlu0 %58
    %v60 = vrcp.pop 2.0
    %v61 = vmul.f32 %v59, %v60
    %v62 = vsub.f32 %v12, %v38
    %v63 = vmul.f32 %v62, %v62
    %v65 = vrot.slane %v63, 6
    %v67 = vsel %vm45, %v65, 0.0
    %v68 = vrot.slane %v67, 4
    %v69 = vadd.f32 %v67, %v68
    %v70 = vrot.slane %v69, 2
    %v71 = vadd.f32 %v69, %v70
    %v72 = vrot.slane %v71, 1
    %v73 = vadd.f32 %v71, %v72
    %v74 = vmax.f32 %v73, 1e-24
    %v75 = vrsqrt.pop %v74
    %v76 = vmul.f32 %v62, %v75
    %vm77 = vcmask 15366
    %v78 = vsel %vm77, %v76, 0.0
    %79 = vadd.xlane.f32.xlu0 %v78
    %v80 = vpop.xlane.xlu0 %79
    %v81 = vmul.f32 %v80, %v60
    %v82 = vrot.slane %v12, 6
    %v84 = vsub.f32 %v12, %v82
    %v85 = vmul.f32 %v84, %v84
    %v87 = vrot.slane %v85, 2
    %v89 = vsel %vm45, %v87, 0.0
    %v90 = vrot.slane %v89, 4
    %v91 = vadd.f32 %v89, %v90
    %v92 = vrot.slane %v91, 2
    %v93 = vadd.f32 %v91, %v92
    %v94 = vrot.slane %v93, 1
    %v95 = vadd.f32 %v93, %v94
    %v96 = vmax.f32 %v95, 1e-24
    %v97 = vrsqrt.pop %v96
    %v98 = vmul.f32 %v84, %v97
    %v99 = vsel %vm56, %v98, 0.0
    %100 = vadd.xlane.f32.xlu0 %v99
    %v101 = vpop.xlane.xlu0 %100
    %v102 = vmul.f32 %v101, %v60
    %v104 = vrot.slane %v13, 4
    %v106 = vsub.f32 %v13, %v104
    %v107 = vmul.f32 %v106, %v106
    %v109 = vrot.slane %v107, 4
    %v111 = vsel %vm45, %v109, 0.0
    %v112 = vrot.slane %v111, 4
    %v113 = vadd.f32 %v111, %v112
    %v114 = vrot.slane %v113, 2
    %v115 = vadd.f32 %v113, %v114
    %v116 = vrot.slane %v115, 1
    %v117 = vadd.f32 %v115, %v116
    %v118 = vmax.f32 %v117, 1e-24
    %v119 = vrsqrt.pop %v118
    %v120 = vmul.f32 %v106, %v119
    %vm121 = vcmask 13316
    %v122 = vsel %vm121, %v120, 0.0
    %123 = vadd.xlane.f32.xlu0 %v122
    %v124 = vpop.xlane.xlu0 %123
    %v125 = vmul.f32 %v124, %v60
    %v126 = vsel %vm45, %v41, 0.0
    %v127 = vrot.slane %v126, 4
    %v128 = vadd.f32 %v126, %v127
    %v129 = vrot.slane %v128, 2
    %v130 = vadd.f32 %v128, %v129
    %v131 = vrot.slane %v130, 1
    %v132 = vadd.f32 %v130, %v131
    %v133 = vmax.f32 %v132, 1e-24
    %v134 = vrsqrt.pop %v133
    %v135 = vmul.f32 %v40, %v134
    %v136 = vsel %vm45, %v135, 0.0
    %137 = vadd.xlane.f32.xlu0 %v136
    %v138 = vpop.xlane.xlu0 %137
    %v139 = vmul.f32 %v138, %v60
    %v140 = vrot.slane %v63, 4
    %v142 = vsel %vm45, %v140, 0.0
    %v143 = vrot.slane %v142, 4
    %v144 = vadd.f32 %v142, %v143
    %v145 = vrot.slane %v144, 2
    %v146 = vadd.f32 %v144, %v145
    %v147 = vrot.slane %v146, 1
    %v148 = vadd.f32 %v146, %v147
    %v149 = vmax.f32 %v148, 1e-24
    %v150 = vrsqrt.pop %v149
    %v151 = vmul.f32 %v62, %v150
    %v152 = vsel %vm121, %v151, 0.0
    %153 = vadd.xlane.f32.xlu0 %v152
    %v154 = vpop.xlane.xlu0 %153
    %v155 = vmul.f32 %v154, %v60
    %v156 = vrot.slane %v85, 4
    %v158 = vsel %vm45, %v156, 0.0
    %v159 = vrot.slane %v158, 4
    %v160 = vadd.f32 %v158, %v159
    %v161 = vrot.slane %v160, 2
    %v162 = vadd.f32 %v160, %v161
    %v163 = vrot.slane %v162, 1
    %v164 = vadd.f32 %v162, %v163
    %v165 = vmax.f32 %v164, 1e-24
    %v166 = vrsqrt.pop %v165
    %v167 = vmul.f32 %v84, %v166
    %v168 = vsel %vm121, %v167, 0.0
    %169 = vadd.xlane.f32.xlu0 %v168
    %v170 = vpop.xlane.xlu0 %169
    %v171 = vmul.f32 %v170, %v60
    %v172 = vsub.f32 %v13, %v82
    %v173 = vmul.f32 %v172, %v172
    %v174 = vsel %vm45, %v173, 0.0
    %v175 = vrot.slane %v174, 4
    %v176 = vadd.f32 %v174, %v175
    %v177 = vrot.slane %v176, 2
    %v178 = vadd.f32 %v176, %v177
    %v179 = vrot.slane %v178, 1
    %v180 = vadd.f32 %v178, %v179
    %v181 = vmax.f32 %v180, 1e-24
    %v182 = vrsqrt.pop %v181
    %v183 = vmul.f32 %v172, %v182
    %v184 = vsel %vm45, %v183, 0.0
    %185 = vadd.xlane.f32.xlu0 %v184
    %v186 = vpop.xlane.xlu0 %185
    %v187 = vmul.f32 %v186, %v60
    %v188 = vrot.slane %v13, 6
    %v190 = vsub.f32 %v13, %v188
    %v191 = vmul.f32 %v190, %v190
    %v193 = vrot.slane %v191, 4
    %v195 = vsel %vm45, %v193, 0.0
    %v196 = vrot.slane %v195, 4
    %v197 = vadd.f32 %v195, %v196
    %v198 = vrot.slane %v197, 2
    %v199 = vadd.f32 %v197, %v198
    %v200 = vrot.slane %v199, 1
    %v201 = vadd.f32 %v199, %v200
    %v202 = vmax.f32 %v201, 1e-24
    %v203 = vrsqrt.pop %v202
    %v204 = vmul.f32 %v190, %v203
    %v205 = vsel %vm121, %v204, 0.0
    %206 = vadd.xlane.f32.xlu0 %v205
    %v207 = vpop.xlane.xlu0 %206
    %v208 = vmul.f32 %v207, %v60
    %v210 = vrot.slane %v61, 4
    %v212 = vmul.f32 %v81, %v210
    %v214 = vrot.slane %v212, 6
    %vm216 = vcmask 1024
    %v217 = vsel %vm216, %v214, 0.0
    %218 = vadd.xlane.f32.xlu0 %v217
    %v219 = vpop.xlane.xlu0 %218
    %v220 = vrot.slane %v219, 4
    %v221 = vadd.f32 %v219, %v220
    %v222 = vrot.slane %v221, 2
    %v223 = vadd.f32 %v221, %v222
    %v224 = vrot.slane %v223, 1
    %v225 = vadd.f32 %v223, %v224
    %s226 = vtos %v225
    %s227 = ssub.f32 1.0, %s226
    %v229 = vrot.slane %v81, 4
    %v231 = vmul.f32 %v102, %v229
    %v233 = vrot.slane %v231, 2
    %v235 = vsel %vm216, %v233, 0.0
    %236 = vadd.xlane.f32.xlu0 %v235
    %v237 = vpop.xlane.xlu0 %236
    %v238 = vrot.slane %v237, 4
    %v239 = vadd.f32 %v237, %v238
    %v240 = vrot.slane %v239, 2
    %v241 = vadd.f32 %v239, %v240
    %v242 = vrot.slane %v241, 1
    %v243 = vadd.f32 %v241, %v242
    %s244 = vtos %v243
    %s245 = ssub.f32 1.0, %s244
    %v247 = vrot.slane %v139, 4
    %v249 = vmul.f32 %v125, %v247
    %v251 = vrot.slane %v249, 4
    %v253 = vsel %vm216, %v251, 0.0
    %254 = vadd.xlane.f32.xlu0 %v253
    %v255 = vpop.xlane.xlu0 %254
    %v256 = vrot.slane %v255, 4
    %v257 = vadd.f32 %v255, %v256
    %v258 = vrot.slane %v257, 2
    %v259 = vadd.f32 %v257, %v258
    %v260 = vrot.slane %v259, 1
    %v261 = vadd.f32 %v259, %v260
    %s262 = vtos %v261
    %s263 = ssub.f32 1.0, %s262
    %v265 = vrot.slane %v155, 4
    %v267 = vmul.f32 %v139, %v265
    %v268 = vsel %vm216, %v267, 0.0
    %269 = vadd.xlane.f32.xlu0 %v268
    %v270 = vpop.xlane.xlu0 %269
    %v271 = vrot.slane %v270, 4
    %v272 = vadd.f32 %v270, %v271
    %v273 = vrot.slane %v272, 2
    %v274 = vadd.f32 %v272, %v273
    %v275 = vrot.slane %v274, 1
    %v276 = vadd.f32 %v274, %v275
    %s277 = vtos %v276
    %s278 = ssub.f32 1.0, %s277
    %v280 = vrot.slane %v171, 4
    %v282 = vmul.f32 %v187, %v280
    %v283 = vsel %vm216, %v282, 0.0
    %284 = vadd.xlane.f32.xlu0 %v283
    %v285 = vpop.xlane.xlu0 %284
    %v286 = vrot.slane %v285, 4
    %v287 = vadd.f32 %v285, %v286
    %v288 = vrot.slane %v287, 2
    %v289 = vadd.f32 %v287, %v288
    %v290 = vrot.slane %v289, 1
    %v291 = vadd.f32 %v289, %v290
    %s292 = vtos %v291
    %s293 = ssub.f32 1.0, %s292
    %v295 = vrot.slane %v187, 4
    %v297 = vmul.f32 %v208, %v295
    %v299 = vrot.slane %v297, 4
    %v301 = vsel %vm216, %v299, 0.0
    %302 = vadd.xlane.f32.xlu0 %v301
    %v303 = vpop.xlane.xlu0 %302
    %v304 = vrot.slane %v303, 4
    %v305 = vadd.f32 %v303, %v304
    %v306 = vrot.slane %v305, 2
    %v307 = vadd.f32 %v305, %v306
    %v308 = vrot.slane %v307, 1
    %v309 = vadd.f32 %v307, %v308
    %s310 = vtos %v309
    %s311 = ssub.f32 1.0, %s310
    %s312 = sadd.f32 %s293, %s311
    %s313 = smul.f32 %s312, 0.05
    %v314 = vrcp.pop 2.0
    %s315 = vtos %v314
    %s316 = smul.f32 %s313, %s315
    %s317 = sadd.f32 %s227, %s245
    %s318 = sadd.f32 %s317, %s263
    %s319 = sadd.f32 %s318, %s278
    %s320 = smul.f32 %s319, 0.05
    %v321 = vrcp.pop 4.0
    %s322 = vtos %v321
    %s323 = smul.f32 %s320, %s322
    %s324 = sadd.f32 %s316, %s323
    %s325 = scalar_lea.smem [#allocation2], 0
    %326 = sst [smem:[%s325]] %s36
    %s327 = scalar_lea.smem [#allocation2], 1
    %328 = sst [smem:[%s327]] %s324
    %s329 = sadd.f32 %s36, %s324
    %s330 = scalar_lea.smem [#allocation2], 2
    %331 = sst [smem:[%s330]] %s329
    // Predicated region
    $region10: #{tpu_custom_call.1} parent=1 // pred_check
      _
    $region11: #{tpu_custom_call.1} parent=1 // pred_check_branch
      %333 = sbr.rel (0) target = $region13
    $region12: #{tpu_custom_call.1} parent=1 // pred_region
      %s335 = ssub.s32 16, 16
      %336 = vsyncadd [#allocation3], %s335
      %339 = dma.smem_to_hbm [#allocation2], 16, %s2, [#allocation3]
    $region13: #{tpu_custom_call.1} parent=1 // pred_fallthru
      _
    // Predicated region
    $region14: #{tpu_custom_call.1} parent=1 // pred_check
      _
    $region15: #{tpu_custom_call.1} parent=1 // pred_check_branch
      %341 = sbr.rel (0) target = $region17
    $region16: #{tpu_custom_call.1} parent=1 // pred_region
      %342 = dma.done [#allocation3], 16
    $region17: #{tpu_custom_call.1} parent=1 // pred_fallthru
      _
    %343 = sfence
    %344 = vsyncpa [#allocation3], 1

</llo_original>
